<compile_context>
chip_gen: v7x
topology: tpu7x:2x2x1
jax: 0.10.0
libtpu: 0.0.40
codegen_flags: <defaults>
</compile_context>

<pallas_src>
import math
from functools import partial

import numpy as np
import jax
import jax.numpy as jnp
from jax.experimental import pallas as pl
from jax.experimental.pallas import tpu as pltpu


# --------------------------------------------------------------------------
# Diffusion schedule buffers (host-side float64, cast to float32 like
# register_buffer in the PyTorch code).
# --------------------------------------------------------------------------
def cosine_beta_schedule(timesteps, s=0.008):
    steps = timesteps + 1
    x = np.linspace(0, timesteps, steps, dtype=np.float64)
    alphas_cumprod = np.cos((x / timesteps + s) / (1 + s) * math.pi * 0.5) ** 2
    alphas_cumprod = alphas_cumprod / alphas_cumprod[0]
    betas = 1.0 - alphas_cumprod[1:] / alphas_cumprod[:-1]
    return np.clip(betas, 0.0, 0.999)


def make_buffers(timesteps=1000, objective="pred_noise"):
    betas = cosine_beta_schedule(timesteps)
    alphas = 1.0 - betas
    alphas_cumprod = np.cumprod(alphas)
    snr = alphas_cumprod / (1.0 - alphas_cumprod)
    if objective == "pred_noise":
        loss_weight = np.ones_like(snr)
    elif objective == "pred_x0":
        loss_weight = snr
    elif objective == "pred_v":
        loss_weight = snr / (snr + 1.0)
    else:
        raise ValueError(objective)
    return dict(
        num_timesteps=int(timesteps),
        sqrt_alphas_cumprod=jnp.asarray(np.sqrt(alphas_cumprod), jnp.float32),
        sqrt_one_minus_alphas_cumprod=jnp.asarray(
            np.sqrt(1.0 - alphas_cumprod), jnp.float32
        ),
        loss_weight=jnp.asarray(loss_weight, jnp.float32),
    )


# --------------------------------------------------------------------------
# Pallas kernel: q_sample + synthetic denoiser + per-sample SSE, over a
# (sample-pair, lane-tile) grid.  Tiles are (spb*C, tn) = (8, tn) f32.
# --------------------------------------------------------------------------
def _p_losses_kernel(
    w_ref,      # (spb*C, C)  f32  W tiled per sample (constant VMEM tile)
    sac_ref,    # (spb*C, 1)  f32  sqrt(alphas_cumprod)[t]   per sublane
    soma_ref,   # (spb*C, 1)  f32  sqrt(1-alphas_cumprod)[t] per sublane
    bias_ref,   # (spb*C, 1)  f32  time_emb[t] + class_emb[classes]
    x_ref,      # (spb*C, tn) f32  x_start tile (spb samples packed on sublanes)
    noise_ref,  # (spb*C, tn) f32  noise tile
    o_ref,      # (1, spb)    f32  per-sample SSE for this pair
    acc_ref,    # (spb*C, tn) f32  elementwise running sum of d*d
    *,
    channels,
    spb,
    objective,
):
    j = pl.program_id(1)
    nj = pl.num_programs(1)
    C = channels
    R = spb * C

    @pl.when(j == 0)
    def _():
        acc_ref[...] = jnp.zeros_like(acc_ref)

    x = x_ref[...]          # (R, tn)
    noise = noise_ref[...]  # (R, tn)
    sac = sac_ref[...]      # (R, 1)
    soma = soma_ref[...]    # (R, 1)

    # q_sample: sqrt(ac)*x0 + sqrt(1-ac)*noise   (full-sublane-density VPU)
    x_noisy = sac * x + soma * noise

    # MSE target per objective (static specialization)
    if objective == "pred_noise":
        target = noise
    elif objective == "pred_x0":
        target = x
    else:  # pred_v
        target = sac * noise - soma * x

    # synthetic denoiser: per-sample h = W @ x_noisy + bias, vectorized over
    # the whole packed tile.  For each k, pick x_noisy row k of the right
    # sample per sublane (sublane-broadcast + select), FMA with W's k-th
    # column.  One tanh on the full (R, tn) tile.
    if spb > 1:
        sub = jax.lax.broadcasted_iota(jnp.int32, (R, 1), 0)
        sample_masks = [sub >= s * C for s in range(1, spb)]

    h = None
    for k in range(C):
        pick = x_noisy[k:k + 1, :]                       # sample 0, row k
        if spb > 1:
            for s in range(1, spb):
                row_s = x_noisy[s * C + k:s * C + k + 1, :]
                pick = jnp.where(sample_masks[s - 1], row_s, pick)
        contrib = w_ref[:, k:k + 1] * pick               # (R,1) * (R|1, tn)
        h = contrib if h is None else h + contrib

    h = jnp.tanh(h + bias_ref[...])                      # single EUP tanh
    d = h - target
    acc_ref[...] += d * d                                # lane-wise accumulator

    # finalize: one reduction per sample pair (loss_weight / mean in JAX)
    @pl.when(j == nj - 1)
    def _():
        acc = acc_ref[...]
        parts = [jnp.sum(acc[s * C:(s + 1) * C, :], keepdims=True)
                 for s in range(spb)]
        o_ref[...] = parts[0] if spb == 1 else jnp.concatenate(parts, axis=1)


def _pick_lane_tile(n, max_tn=32768):
    """Largest lane tile up to ~1 MiB/input block (8 sublanes f32)."""
    if n <= max_tn:
        return n
    tn = (max_tn // 128) * 128
    while tn >= 128:
        if n % tn == 0:
            return tn
        tn -= 128
    return n  # no 128-multiple divisor: run the whole row as one block


def gaussian_diffusion_forward(img, classes, t, noise, buffers, model_params,
                               objective="pred_noise"):
    """img: (B, C, N) float32 (PyTorch NCL). Returns scalar loss (float32)."""
    B, C, N = img.shape
    img = img.astype(jnp.float32)
    noise = noise.astype(jnp.float32)
    t = t.astype(jnp.int32)

    spb = 2 if B % 2 == 0 else 1        # samples packed per block (sublanes)
    bp = B // spb                        # number of sample pairs (grid dim 0)
    R = spb * C
    tn = _pick_lane_tile(N)
    n_tiles = N // tn

    # Per-sample scalars gathered once (tiny (bp, R, 1) arrays; ~B*C floats).
    sac = buffers["sqrt_alphas_cumprod"][t]
    soma = buffers["sqrt_one_minus_alphas_cumprod"][t]
    sac_col = jnp.repeat(sac, C).reshape(bp, R, 1)
    soma_col = jnp.repeat(soma, C).reshape(bp, R, 1)
    bias = (model_params["time_emb"][t]
            + model_params["class_emb"][classes]).astype(jnp.float32)  # (B, C)
    bias_col = bias.reshape(bp, R, 1)
    wcols = jnp.tile(model_params["w"].astype(jnp.float32), (spb, 1))  # (R, C)

    # Contiguous (free) reshape: pack spb samples onto the sublane axis.
    x3 = img.reshape(bp, R, N)
    n3 = noise.reshape(bp, R, N)

    kernel = partial(_p_losses_kernel, channels=C, spb=spb, objective=objective)

    grid_spec = pltpu.PrefetchScalarGridSpec(
        num_scalar_prefetch=0,
        grid=(bp, n_tiles),
        in_specs=[
            pl.BlockSpec((R, C), lambda b, j: (0, 0)),            # W (constant)
            pl.BlockSpec((None, R, 1), lambda b, j: (b, 0, 0)),   # sac
            pl.BlockSpec((None, R, 1), lambda b, j: (b, 0, 0)),   # soma
            pl.BlockSpec((None, R, 1), lambda b, j: (b, 0, 0)),   # bias
            pl.BlockSpec((None, R, tn), lambda b, j: (b, 0, j)),  # x_start
            pl.BlockSpec((None, R, tn), lambda b, j: (b, 0, j)),  # noise
        ],
        out_specs=pl.BlockSpec((None, 1, spb), lambda b, j: (b, 0, 0)),
        scratch_shapes=[pltpu.VMEM((R, tn), jnp.float32)],
    )

    # 2 big inputs x 2 buffers + accumulator + headroom (tiny inputs/outputs
    # are negligible); explicit limit keeps tiling portable to v7x's 64 MiB.
    block_bytes = R * tn * 4
    vmem_bytes = 2 * 2 * block_bytes + block_bytes + (2 << 20)
    vmem_limit = int(min(max(vmem_bytes, 8 << 20), 48 << 20))

    out = pl.pallas_call(
        kernel,
        grid_spec=grid_spec,
        out_shape=jax.ShapeDtypeStruct((bp, 1, spb), jnp.float32),
        compiler_params=pltpu.CompilerParams(
            dimension_semantics=("parallel", "arbitrary"),
            vmem_limit_bytes=vmem_limit,
        ),
    )(wcols, sac_col, soma_col, bias_col, x3, n3)

    # loss = mean_b( lw[t_b] * mean_{c,n}(err^2) )  -- lw/mean in plain JAX.
    sse = out.reshape(B)
    lw = buffers["loss_weight"][t]
    return jnp.mean(sse * (lw / float(C * N)))


# --------------------------------------------------------------------------
# Pure-JAX reference (same math, no Pallas) for a correctness check.
# --------------------------------------------------------------------------
def reference_loss(img, classes, t, noise, buffers, model_params,
                   objective="pred_noise"):
    sac = buffers["sqrt_alphas_cumprod"][t][:, None, None]
    soma = buffers["sqrt_one_minus_alphas_cumprod"][t][:, None, None]
    x_noisy = sac * img + soma * noise
    bias = model_params["time_emb"][t] + model_params["class_emb"][classes]
    h = jnp.einsum("ck,bkn->bcn", model_params["w"], x_noisy) + bias[:, :, None]
    model_out = jnp.tanh(h)
    if objective == "pred_noise":
        target = noise
    elif objective == "pred_x0":
        target = img
    else:
        target = sac * noise - soma * img
    per_sample = jnp.mean((model_out - target) ** 2, axis=(1, 2))
    lw = buffers["loss_weight"][t]
    return jnp.mean(per_sample * lw)


# --------------------------------------------------------------------------
# Driver
# --------------------------------------------------------------------------
def _run_case(B, C, N, objective, key, rtol):
    TIMESTEPS = 1000
    NUM_CLASSES = 8
    buffers = make_buffers(TIMESTEPS, objective=objective)
    k_img, k_t, k_noise, k_cls, k_w, k_te, k_ce = jax.random.split(key, 7)

    img = jax.random.normal(k_img, (B, C, N), dtype=jnp.float32)
    classes = jax.random.randint(k_cls, (B,), 0, NUM_CLASSES)
    # forward(): t = randint(0, num_timesteps, (b,)); noise = randn_like(x_start)
    t = jax.random.randint(k_t, (B,), 0, buffers["num_timesteps"])
    noise = jax.random.normal(k_noise, (B, C, N), dtype=jnp.float32)

    model_params = dict(
        w=0.3 * jax.random.normal(k_w, (C, C), dtype=jnp.float32),
        time_emb=0.1 * jax.random.normal(k_te, (TIMESTEPS, C), dtype=jnp.float32),
        class_emb=0.1 * jax.random.normal(k_ce, (NUM_CLASSES, C), dtype=jnp.float32),
    )

    loss = jax.block_until_ready(
        gaussian_diffusion_forward(img, classes, t, noise, buffers,
                                   model_params, objective=objective))
    ref = jax.block_until_ready(
        reference_loss(img, classes, t, noise, buffers, model_params,
                       objective=objective))
    assert loss.shape == () and bool(jnp.isfinite(loss))
    np.testing.assert_allclose(np.asarray(loss), np.asarray(ref),
                               rtol=rtol, atol=1e-5)


if __name__ == "__main__":
    key = jax.random.PRNGKey(0)
    k1, k2, k3 = jax.random.split(key, 3)
    # primary small config implied by the module: (B, C, N) = (2, 4, 16)
    _run_case(2, 4, 16, "pred_noise", k1, rtol=1e-4)
    # exercises the real tiling path: packed pairs, multiple lane tiles
    _run_case(4, 4, 65536, "pred_noise", k2, rtol=5e-4)
    # odd batch (single-sample blocks) and the pred_v objective/loss_weight
    _run_case(3, 4, 384, "pred_v", k3, rtol=1e-4)
    print("KERNEL_OK")
</pallas_src>

<mosaic_0001>
module attributes {stable_mosaic.version = 11 : i64} {
  func.func @_p_losses_kernel(%arg0: i32, %arg1: i32, %arg2: memref<8x4xf32, #tpu.memory_space<vmem>>, %arg3: memref<1x8x1xf32, #tpu.memory_space<vmem>>, %arg4: memref<1x8x1xf32, #tpu.memory_space<vmem>>, %arg5: memref<1x8x1xf32, #tpu.memory_space<vmem>>, %arg6: memref<1x8x16xf32, #tpu.memory_space<vmem>>, %arg7: memref<1x8x16xf32, #tpu.memory_space<vmem>>, %arg8: memref<1x1x2xf32, #tpu.memory_space<vmem>>, %arg9: memref<8x16xf32, #tpu.memory_space<vmem>>) attributes {dimension_semantics = [#tpu.dimension_semantics<parallel>, #tpu.dimension_semantics<arbitrary>], iteration_bounds = array<i64: 1, 1>, scalar_prefetch = 0 : i64, scratch_operands = 1 : i64, tpu.core_type = #tpu.core_type<tc>, window_params = [{pipeline_mode = #tpu.pipeline_mode<synchronous>, transform_indices = @transform_0, window_bounds = array<i64: 8, 4>}, {transform_indices = @transform_1, window_bounds = array<i64: 1, 8, 1>}, {transform_indices = @transform_2, window_bounds = array<i64: 1, 8, 1>}, {transform_indices = @transform_3, window_bounds = array<i64: 1, 8, 1>}, {transform_indices = @transform_4, window_bounds = array<i64: 1, 8, 16>}, {transform_indices = @transform_5, window_bounds = array<i64: 1, 8, 16>}, {transform_indices = @transform_6, window_bounds = array<i64: 1, 1, 2>}]} {
    %c0_i32 = arith.constant 0 : i32
    %0 = arith.cmpi eq, %arg1, %c0_i32 : i32
    %1 = arith.extui %0 : i1 to i32
    %c0_i32_0 = arith.constant 0 : i32
    %2 = arith.cmpi ne, %1, %c0_i32_0 : i32
    scf.if %2 {
      %cst = arith.constant 0.000000e+00 : f32
      %83 = vector.broadcast %cst : f32 to vector<8x16xf32>
      %c0_26 = arith.constant 0 : index
      %c0_27 = arith.constant 0 : index
      %84 = vector.load %arg9[%c0_26, %c0_27] : memref<8x16xf32, #tpu.memory_space<vmem>>, vector<8x16xf32>
      tpu.vector_store %arg9[%c0_26, %c0_27], %83 {strides = array<i32>} : memref<8x16xf32, #tpu.memory_space<vmem>>, vector<8x16xf32>,
    } else {
    }
    %c0 = arith.constant 0 : index
    %c0_1 = arith.constant 0 : index
    %c0_2 = arith.constant 0 : index
    %3 = vector.load %arg6[%c0, %c0_1, %c0_2] : memref<1x8x16xf32, #tpu.memory_space<vmem>>, vector<1x8x16xf32>
    %4 = vector.shape_cast %3 : vector<1x8x16xf32> to vector<8x16xf32>
    %c0_3 = arith.constant 0 : index
    %c0_4 = arith.constant 0 : index
    %c0_5 = arith.constant 0 : index
    %5 = vector.load %arg7[%c0_3, %c0_4, %c0_5] : memref<1x8x16xf32, #tpu.memory_space<vmem>>, vector<1x8x16xf32>
    %6 = vector.shape_cast %5 : vector<1x8x16xf32> to vector<8x16xf32>
    %c0_6 = arith.constant 0 : index
    %c0_7 = arith.constant 0 : index
    %c0_8 = arith.constant 0 : index
    %7 = vector.load %arg3[%c0_6, %c0_7, %c0_8] : memref<1x8x1xf32, #tpu.memory_space<vmem>>, vector<1x8x1xf32>
    %8 = vector.shape_cast %7 : vector<1x8x1xf32> to vector<8x1xf32>
    %c0_9 = arith.constant 0 : index
    %c0_10 = arith.constant 0 : index
    %c0_11 = arith.constant 0 : index
    %9 = vector.load %arg4[%c0_9, %c0_10, %c0_11] : memref<1x8x1xf32, #tpu.memory_space<vmem>>, vector<1x8x1xf32>
    %10 = vector.shape_cast %9 : vector<1x8x1xf32> to vector<8x1xf32>
    %11 = vector.broadcast %8 : vector<8x1xf32> to vector<8x16xf32>
    %12 = arith.mulf %11, %4 : vector<8x16xf32>
    %13 = vector.broadcast %10 : vector<8x1xf32> to vector<8x16xf32>
    %14 = arith.mulf %13, %6 : vector<8x16xf32>
    %15 = arith.addf %12, %14 : vector<8x16xf32>
    %16 = tpu.iota {dimensions = array<i32: 0>} : vector<8x1xi32>
    %c4_i32 = arith.constant 4 : i32
    %17 = vector.broadcast %c4_i32 : i32 to vector<8x1xi32>
    %18 = arith.cmpi sge, %16, %17 : vector<8x1xi32>
    %19 = vector.extract_strided_slice %15 {offsets = [0, 0], sizes = [1, 16], strides = [1, 1]} : vector<8x16xf32> to vector<1x16xf32>
    %20 = vector.extract_strided_slice %15 {offsets = [4, 0], sizes = [1, 16], strides = [1, 1]} : vector<8x16xf32> to vector<1x16xf32>
    %21 = vector.shape_cast %18 : vector<8x1xi1> to vector<8x1xi1>
    %22 = vector.broadcast %21 : vector<8x1xi1> to vector<8x16xi1>
    %23 = vector.shape_cast %20 : vector<1x16xf32> to vector<1x16xf32>
    %24 = vector.broadcast %23 : vector<1x16xf32> to vector<8x16xf32>
    %25 = vector.shape_cast %19 : vector<1x16xf32> to vector<1x16xf32>
    %26 = vector.broadcast %25 : vector<1x16xf32> to vector<8x16xf32>
    %27 = arith.select %22, %24, %26 : vector<8x16xi1>, vector<8x16xf32>
    %c0_12 = arith.constant 0 : index
    %c0_13 = arith.constant 0 : index
    %28 = vector.load %arg2[%c0_12, %c0_13] : memref<8x4xf32, #tpu.memory_space<vmem>>, vector<8x1xf32>
    %29 = vector.broadcast %28 : vector<8x1xf32> to vector<8x16xf32>
    %30 = arith.mulf %29, %27 : vector<8x16xf32>
    %31 = vector.extract_strided_slice %15 {offsets = [1, 0], sizes = [1, 16], strides = [1, 1]} : vector<8x16xf32> to vector<1x16xf32>
    %32 = vector.extract_strided_slice %15 {offsets = [5, 0], sizes = [1, 16], strides = [1, 1]} : vector<8x16xf32> to vector<1x16xf32>
    %33 = vector.shape_cast %18 : vector<8x1xi1> to vector<8x1xi1>
    %34 = vector.broadcast %33 : vector<8x1xi1> to vector<8x16xi1>
    %35 = vector.shape_cast %32 : vector<1x16xf32> to vector<1x16xf32>
    %36 = vector.broadcast %35 : vector<1x16xf32> to vector<8x16xf32>
    %37 = vector.shape_cast %31 : vector<1x16xf32> to vector<1x16xf32>
    %38 = vector.broadcast %37 : vector<1x16xf32> to vector<8x16xf32>
    %39 = arith.select %34, %36, %38 : vector<8x16xi1>, vector<8x16xf32>
    %c0_14 = arith.constant 0 : index
    %c1 = arith.constant 1 : index
    %40 = vector.load %arg2[%c0_14, %c1] : memref<8x4xf32, #tpu.memory_space<vmem>>, vector<8x1xf32>
    %41 = vector.broadcast %40 : vector<8x1xf32> to vector<8x16xf32>
    %42 = arith.mulf %41, %39 : vector<8x16xf32>
    %43 = arith.addf %30, %42 : vector<8x16xf32>
    %44 = vector.extract_strided_slice %15 {offsets = [2, 0], sizes = [1, 16], strides = [1, 1]} : vector<8x16xf32> to vector<1x16xf32>
    %45 = vector.extract_strided_slice %15 {offsets = [6, 0], sizes = [1, 16], strides = [1, 1]} : vector<8x16xf32> to vector<1x16xf32>
    %46 = vector.shape_cast %18 : vector<8x1xi1> to vector<8x1xi1>
    %47 = vector.broadcast %46 : vector<8x1xi1> to vector<8x16xi1>
    %48 = vector.shape_cast %45 : vector<1x16xf32> to vector<1x16xf32>
    %49 = vector.broadcast %48 : vector<1x16xf32> to vector<8x16xf32>
    %50 = vector.shape_cast %44 : vector<1x16xf32> to vector<1x16xf32>
    %51 = vector.broadcast %50 : vector<1x16xf32> to vector<8x16xf32>
    %52 = arith.select %47, %49, %51 : vector<8x16xi1>, vector<8x16xf32>
    %c0_15 = arith.constant 0 : index
    %c2 = arith.constant 2 : index
    %53 = vector.load %arg2[%c0_15, %c2] : memref<8x4xf32, #tpu.memory_space<vmem>>, vector<8x1xf32>
    %54 = vector.broadcast %53 : vector<8x1xf32> to vector<8x16xf32>
    %55 = arith.mulf %54, %52 : vector<8x16xf32>
    %56 = arith.addf %43, %55 : vector<8x16xf32>
    %57 = vector.extract_strided_slice %15 {offsets = [3, 0], sizes = [1, 16], strides = [1, 1]} : vector<8x16xf32> to vector<1x16xf32>
    %58 = vector.extract_strided_slice %15 {offsets = [7, 0], sizes = [1, 16], strides = [1, 1]} : vector<8x16xf32> to vector<1x16xf32>
    %59 = vector.shape_cast %18 : vector<8x1xi1> to vector<8x1xi1>
    %60 = vector.broadcast %59 : vector<8x1xi1> to vector<8x16xi1>
    %61 = vector.shape_cast %58 : vector<1x16xf32> to vector<1x16xf32>
    %62 = vector.broadcast %61 : vector<1x16xf32> to vector<8x16xf32>
    %63 = vector.shape_cast %57 : vector<1x16xf32> to vector<1x16xf32>
    %64 = vector.broadcast %63 : vector<1x16xf32> to vector<8x16xf32>
    %65 = arith.select %60, %62, %64 : vector<8x16xi1>, vector<8x16xf32>
    %c0_16 = arith.constant 0 : index
    %c3 = arith.constant 3 : index
    %66 = vector.load %arg2[%c0_16, %c3] : memref<8x4xf32, #tpu.memory_space<vmem>>, vector<8x1xf32>
    %67 = vector.broadcast %66 : vector<8x1xf32> to vector<8x16xf32>
    %68 = arith.mulf %67, %65 : vector<8x16xf32>
    %69 = arith.addf %56, %68 : vector<8x16xf32>
    %c0_17 = arith.constant 0 : index
    %c0_18 = arith.constant 0 : index
    %c0_19 = arith.constant 0 : index
    %70 = vector.load %arg5[%c0_17, %c0_18, %c0_19] : memref<1x8x1xf32, #tpu.memory_space<vmem>>, vector<1x8x1xf32>
    %71 = vector.shape_cast %70 : vector<1x8x1xf32> to vector<8x1xf32>
    %72 = vector.broadcast %71 : vector<8x1xf32> to vector<8x16xf32>
    %73 = arith.addf %69, %72 : vector<8x16xf32>
    %74 = math.tanh %73 : vector<8x16xf32>
    %75 = arith.subf %74, %6 : vector<8x16xf32>
    %c0_20 = arith.constant 0 : index
    %c0_21 = arith.constant 0 : index
    %76 = vector.load %arg9[%c0_20, %c0_21] : memref<8x16xf32, #tpu.memory_space<vmem>>, vector<8x16xf32>
    %77 = arith.mulf %75, %75 : vector<8x16xf32>
    %78 = arith.addf %76, %77 : vector<8x16xf32>
    %c0_22 = arith.constant 0 : index
    %c0_23 = arith.constant 0 : index
    %79 = vector.load %arg9[%c0_22, %c0_23] : memref<8x16xf32, #tpu.memory_space<vmem>>, vector<8x16xf32>
    tpu.vector_store %arg9[%c0_22, %c0_23], %78 {strides = array<i32>} : memref<8x16xf32, #tpu.memory_space<vmem>>, vector<8x16xf32>,
    %c0_i32_24 = arith.constant 0 : i32
    %80 = arith.cmpi eq, %arg1, %c0_i32_24 : i32
    %81 = arith.extui %80 : i1 to i32
    %c0_i32_25 = arith.constant 0 : i32
    %82 = arith.cmpi ne, %81, %c0_i32_25 : i32
    scf.if %82 {
      %c0_26 = arith.constant 0 : index
      %c0_27 = arith.constant 0 : index
      %83 = vector.load %arg9[%c0_26, %c0_27] : memref<8x16xf32, #tpu.memory_space<vmem>>, vector<8x16xf32>
      %84 = vector.extract_strided_slice %83 {offsets = [0, 0], sizes = [4, 16], strides = [1, 1]} : vector<8x16xf32> to vector<4x16xf32>
      %85 = vector.shape_cast %84 : vector<4x16xf32> to vector<1x4x16xf32>
      %cst = arith.constant dense<0.000000e+00> : vector<1xf32>
      %86 = vector.multi_reduction <add>, %85, %cst [1, 2] : vector<1x4x16xf32> to vector<1xf32>
      %87 = vector.shape_cast %86 : vector<1xf32> to vector<1x1x1xf32>
      %88 = vector.extract %87[0, 0, 0] : f32 from vector<1x1x1xf32>
      %89 = vector.broadcast %88 : f32 to vector<1x1xf32>
      %90 = vector.extract_strided_slice %83 {offsets = [4, 0], sizes = [4, 16], strides = [1, 1]} : vector<8x16xf32> to vector<4x16xf32>
      %91 = vector.shape_cast %90 : vector<4x16xf32> to vector<1x4x16xf32>
      %cst_28 = arith.constant dense<0.000000e+00> : vector<1xf32>
      %92 = vector.multi_reduction <add>, %91, %cst_28 [1, 2] : vector<1x4x16xf32> to vector<1xf32>
      %93 = vector.shape_cast %92 : vector<1xf32> to vector<1x1x1xf32>
      %94 = vector.extract %93[0, 0, 0] : f32 from vector<1x1x1xf32>
      %95 = vector.broadcast %94 : f32 to vector<1x1xf32>
      %96 = tpu.concatenate %89, %95 in 1 : vector<1x1xf32>, vector<1x1xf32> -> vector<1x2xf32>
      %c0_29 = arith.constant 0 : index
      %c0_30 = arith.constant 0 : index
      %c0_31 = arith.constant 0 : index
      %97 = vector.load %arg8[%c0_29, %c0_30, %c0_31] : memref<1x1x2xf32, #tpu.memory_space<vmem>>, vector<1x1x2xf32>
      %98 = vector.shape_cast %97 : vector<1x1x2xf32> to vector<1x2xf32>
      %99 = vector.shape_cast %96 : vector<1x2xf32> to vector<1x1x2xf32>
      tpu.vector_store %arg8[%c0_29, %c0_30, %c0_31], %99 {strides = array<i32>} : memref<1x1x2xf32, #tpu.memory_space<vmem>>, vector<1x1x2xf32>,
    } else {
    }
    return
  }
  func.func @transform_0(%arg0: i32, %arg1: i32) -> (i32, i32) {
    %c0_i32 = arith.constant 0 : i32
    %c0_i32_0 = arith.constant 0 : i32
    %c0_i32_1 = arith.constant 0 : i32
    return %c0_i32, %c0_i32_0 : i32, i32
  }
  func.func @transform_1(%arg0: i32, %arg1: i32) -> (i32, i32, i32) {
    %c0_i32 = arith.constant 0 : i32
    %c0_i32_0 = arith.constant 0 : i32
    %c0_i32_1 = arith.constant 0 : i32
    return %arg0, %c0_i32, %c0_i32_0 : i32, i32, i32
  }
  func.func @transform_2(%arg0: i32, %arg1: i32) -> (i32, i32, i32) {
    %c0_i32 = arith.constant 0 : i32
    %c0_i32_0 = arith.constant 0 : i32
    %c0_i32_1 = arith.constant 0 : i32
    return %arg0, %c0_i32, %c0_i32_0 : i32, i32, i32
  }
  func.func @transform_3(%arg0: i32, %arg1: i32) -> (i32, i32, i32) {
    %c0_i32 = arith.constant 0 : i32
    %c0_i32_0 = arith.constant 0 : i32
    %c0_i32_1 = arith.constant 0 : i32
    return %arg0, %c0_i32, %c0_i32_0 : i32, i32, i32
  }
  func.func @transform_4(%arg0: i32, %arg1: i32) -> (i32, i32, i32) {
    %c0_i32 = arith.constant 0 : i32
    %c0_i32_0 = arith.constant 0 : i32
    return %arg0, %c0_i32, %arg1 : i32, i32, i32
  }
  func.func @transform_5(%arg0: i32, %arg1: i32) -> (i32, i32, i32) {
    %c0_i32 = arith.constant 0 : i32
    %c0_i32_0 = arith.constant 0 : i32
    return %arg0, %c0_i32, %arg1 : i32, i32, i32
  }
  func.func @transform_6(%arg0: i32, %arg1: i32) -> (i32, i32, i32) {
    %c0_i32 = arith.constant 0 : i32
    %c0_i32_0 = arith.constant 0 : i32
    %c0_i32_1 = arith.constant 0 : i32
    return %arg0, %c0_i32, %c0_i32_0 : i32, i32, i32
  }
}

</mosaic_0001>

<llo_original>
// kernel: tpu_custom_call.1
$region0: #{tpu_custom_call.1}
  #allocation0 [shape = 'u32[]', space=smem, size = 0x4, offset = 0x4, fixed_abs, tag = 'smem constant byte address 0x4 - core index']
  #allocation1 [shape = 'u32[144,128]{1,0:T(1,128)}', space=vmem, size = 0x12000, scoped, tag = 'internal scratch']
  #allocation2 [shape = 'f32[8,16]{1,0:T(8,128)}', space=vmem, size = 0x1000, scoped, tag = 'scratch operand']
  %s0 = inlined_call_operand.vmem [shape: f32[8,4], index: 0, kind: input, shape index: {}]
  %s1 = inlined_call_operand.vmem [shape: f32[1,8,1], index: 1, kind: input, shape index: {}]
  %s2 = inlined_call_operand.vmem [shape: f32[1,8,1], index: 2, kind: input, shape index: {}]
  %s3 = inlined_call_operand.vmem [shape: f32[1,8,1], index: 3, kind: input, shape index: {}]
  %s4 = inlined_call_operand.vmem [shape: f32[1,8,16], index: 4, kind: input, shape index: {}]
  %s5 = inlined_call_operand.vmem [shape: f32[1,8,16], index: 5, kind: input, shape index: {}]
  %s6 = inlined_call_operand.hbm [shape: f32[1,1,2], index: 6, kind: output, shape index: {}]
  %s7 = sld [smem:[#allocation0]]
  $region42: #{tpu_custom_call.1} parent=0
    _
  %s9 = ssub.s32 1, %s7
  %s10 = scalar_select 0, %s9, %s7
  $region1: #{tpu_custom_call.1} parent=0
    #allocation3 [shape = 'u8[512]{0}', space=vmem, size = 0x400, scoped, tag = 'output window, operand 0, single buffered']
    #allocation4 [shape = 's32[1]{0}', space=sflag, size = 0x4, scoped, tag = 'scoped memory for tpu_custom_call.1']
    %11 = vsyncpa [#allocation4], 0
    // Predicated region
    $region2: #{tpu_custom_call.1} parent=1 // pred_check
      _
    $region3: #{tpu_custom_call.1} parent=1 // pred_check_branch
      %13 = sbr.rel (0) target = $region5
    $region4: #{tpu_custom_call.1} parent=1 // pred_region
      _
    $region5: #{tpu_custom_call.1} parent=1 // pred_fallthru
      _
    // Predicated region
    $region6: #{tpu_custom_call.1} parent=1 // pred_check
      _
    $region7: #{tpu_custom_call.1} parent=1 // pred_check_branch
      %15 = sbr.rel (0) target = $region9
    $region8: #{tpu_custom_call.1} parent=1 // pred_region
      _
    $region9: #{tpu_custom_call.1} parent=1 // pred_fallthru
      _
    // Predicated region
    $region10: #{tpu_custom_call.1} parent=1 // pred_check
      _
    $region11: #{tpu_custom_call.1} parent=1 // pred_check_branch
      %17 = sbr.rel (0) target = $region13
    $region12: #{tpu_custom_call.1} parent=1 // pred_region
      _
    $region13: #{tpu_custom_call.1} parent=1 // pred_fallthru
      _
    // Predicated region
    $region14: #{tpu_custom_call.1} parent=1 // pred_check
      _
    $region15: #{tpu_custom_call.1} parent=1 // pred_check_branch
      %19 = sbr.rel (0) target = $region17
    $region16: #{tpu_custom_call.1} parent=1 // pred_region
      _
    $region17: #{tpu_custom_call.1} parent=1 // pred_fallthru
      _
    // Predicated region
    $region18: #{tpu_custom_call.1} parent=1 // pred_check
      _
    $region19: #{tpu_custom_call.1} parent=1 // pred_check_branch
      %21 = sbr.rel (0) target = $region21
    $region20: #{tpu_custom_call.1} parent=1 // pred_region
      _
    $region21: #{tpu_custom_call.1} parent=1 // pred_fallthru
      _
    // Predicated region
    $region22: #{tpu_custom_call.1} parent=1 // pred_check
      _
    $region23: #{tpu_custom_call.1} parent=1 // pred_check_branch
      %23 = sbr.rel (0) target = $region25
    $region24: #{tpu_custom_call.1} parent=1 // pred_region
      _
    $region25: #{tpu_custom_call.1} parent=1 // pred_fallthru
      _
    %p24 = scmp.eq.s32.totalorder 0, 0
    // Predicated region
    $region26: #{tpu_custom_call.1} parent=1 // pred_check
      %p25 = pneg %p24
    $region27: #{tpu_custom_call.1} parent=1 // pred_check_branch
      %27 = sbr.rel (%p25) target = $region29
    $region28: #{tpu_custom_call.1} parent=1 // pred_region
      %vm28 = vcmask 130048
      %29 = vst.msk [vmem:[#allocation2] sm:$0xff] %vm28, 0.0
    $region29: #{tpu_custom_call.1} parent=1 // pred_fallthru
      _
    %v30 = vld [vmem:[%s4] sm:$0xff]
    %v31 = vld [vmem:[%s5] sm:$0xff]
    %v32 = vld [vmem:[%s1] sm:$0xff]
    %v33 = vld [vmem:[%s2] sm:$0xff]
    %35 = vset.pattern.permute.xlu0 0
    %36 = vperm.xlu0 %35, %v32
    %v37 = vpop.permute.xlu0 %36
    %v39 = vmul.f32 %v37, %v30
    %41 = vset.pattern.permute.xlu0 0
    %42 = vperm.xlu0 %41, %v33
    %v43 = vpop.permute.xlu0 %42
    %v45 = vmul.f32 %v43, %v31
    %v46 = vadd.f32 %v39, %v45
    %v47 = vlaneseq
    %v48 = vshrl.u32 %v47, 7
    %vm49 = vcmp.ge.s32.totalorder %v48, 4
    %v50 = vsel %vm49, 1, 0
    %vm51 = vcmp.eq.s32.totalorder %v50, 1
    %v52 = vlaneseq
    %v53 = vshrl.u32 %v52, 7
    %v54 = vsub.s32 4, %v53
    %v55 = vrot.slane %v46, %v54
    %v56 = vlaneseq
    %v57 = vshrl.u32 %v56, 7
    %v58 = vsub.s32 0, %v57
    %v59 = vrot.slane %v46, %v58
    %v60 = vsel %vm51, %v55, %v59
    %v61 = vld [vmem:[%s0] sm:$0xff]
    %63 = vset.pattern.permute.xlu0 0
    %64 = vperm.xlu0 %63, %v61
    %v65 = vpop.permute.xlu0 %64
    %v67 = vmul.f32 %v65, %v60
    %v68 = vlaneseq
    %v69 = vshrl.u32 %v68, 7
    %v70 = vsub.s32 5, %v69
    %v71 = vrot.slane %v46, %v70
    %v72 = vlaneseq
    %v73 = vshrl.u32 %v72, 7
    %v74 = vsub.s32 1, %v73
    %v75 = vrot.slane %v46, %v74
    %v76 = vsel %vm51, %v71, %v75
    %77 = vset.pattern.permute.xlu0 1
    %78 = vperm.xlu0 %77, %v61
    %v79 = vpop.permute.xlu0 %78
    %v81 = vmul.f32 %v79, %v76
    %v82 = vadd.f32 %v67, %v81
    %v83 = vlaneseq
    %v84 = vshrl.u32 %v83, 7
    %v85 = vsub.s32 6, %v84
    %v86 = vrot.slane %v46, %v85
    %v87 = vlaneseq
    %v88 = vshrl.u32 %v87, 7
    %v89 = vsub.s32 2, %v88
    %v90 = vrot.slane %v46, %v89
    %v91 = vsel %vm51, %v86, %v90
    %92 = vset.pattern.permute.xlu0 2
    %93 = vperm.xlu0 %92, %v61
    %v94 = vpop.permute.xlu0 %93
    %v96 = vmul.f32 %v94, %v91
    %v97 = vadd.f32 %v82, %v96
    %v98 = vlaneseq
    %v99 = vshrl.u32 %v98, 7
    %v100 = vsub.s32 7, %v99
    %v101 = vrot.slane %v46, %v100
    %v102 = vlaneseq
    %v103 = vshrl.u32 %v102, 7
    %v104 = vsub.s32 3, %v103
    %v105 = vrot.slane %v46, %v104
    %v106 = vsel %vm51, %v101, %v105
    %107 = vset.pattern.permute.xlu0 3
    %108 = vperm.xlu0 %107, %v61
    %v109 = vpop.permute.xlu0 %108
    %v111 = vmul.f32 %v109, %v106
    %v112 = vadd.f32 %v97, %v111
    %v113 = vld [vmem:[%s3] sm:$0xff]
    %115 = vset.pattern.permute.xlu0 0
    %116 = vperm.xlu0 %115, %v113
    %v117 = vpop.permute.xlu0 %116
    %v119 = vadd.f32 %v112, %v117
    %v120 = vtanh.pop %v119
    %v121 = vsub.f32 %v120, %v31
    %v122 = vld [vmem:[#allocation2] sm:$0xff]
    %v123 = vmul.f32 %v121, %v121
    %v124 = vadd.f32 %v122, %v123
    %vm125 = vcmask 130048
    %126 = vst.msk [vmem:[#allocation2] sm:$0xff] %vm125, %v124
    // Predicated region
    $region30: #{tpu_custom_call.1} parent=1 // pred_check
      %p127 = pneg %p24
    $region31: #{tpu_custom_call.1} parent=1 // pred_check_branch
      %129 = sbr.rel (%p127) target = $region33
    $region32: #{tpu_custom_call.1} parent=1 // pred_region
      %v130 = vld [vmem:[#allocation2] sm:$0xff]
      %vm131 = vcmask 125952
      %v132 = vsel %vm131, %v130, 0.0
      %133 = vadd.xlane.f32.xlu0 %v132
      %v134 = vpop.xlane.xlu0 %133
      %v135 = vrot.slane %v134, 4
      %v136 = vadd.f32 %v134, %v135
      %v137 = vrot.slane %v136, 2
      %v138 = vadd.f32 %v136, %v137
      %v139 = vrot.slane %v138, 1
      %v140 = vadd.f32 %v138, %v139
      %s141 = vtos %v140
      %v142 = vstv %s141
      %v144 = vrot.slane %v130, 4
      %v146 = vsel %vm131, %v144, 0.0
      %147 = vadd.xlane.f32.xlu0 %v146
      %v148 = vpop.xlane.xlu0 %147
      %v149 = vrot.slane %v148, 4
      %v150 = vadd.f32 %v148, %v149
      %v151 = vrot.slane %v150, 2
      %v152 = vadd.f32 %v150, %v151
      %v153 = vrot.slane %v152, 1
      %v154 = vadd.f32 %v152, %v153
      %s155 = vtos %v154
      %v156 = vstv %s155
      %vm157 = vcmask 7168
      %v158 = vsel %vm157, %v142, %v156
      %vm159 = vcmask 8192
      %160 = vst.msk [vmem:[#allocation3] sm:$0x1] %vm159, %v158
    $region33: #{tpu_custom_call.1} parent=1 // pred_fallthru
      _
    // Predicated region
    $region34: #{tpu_custom_call.1} parent=1 // pred_check
      _
    $region35: #{tpu_custom_call.1} parent=1 // pred_check_branch
      %162 = sbr.rel (0) target = $region37
    $region36: #{tpu_custom_call.1} parent=1 // pred_region
      %s164 = ssub.s32 16, 16
      %165 = vsyncadd [#allocation4], %s164
      %s167 = sshll.u32 [#allocation3], 4
      %s168 = int_to_ptr.vmem [resolvable:$true] %s167
      %170 = dma.vmem_to_hbm [thread:$0]  %s168, 16, %s6, [#allocation4]
    $region37: #{tpu_custom_call.1} parent=1 // pred_fallthru
      _
    // Predicated region
    $region38: #{tpu_custom_call.1} parent=1 // pred_check
      _
    $region39: #{tpu_custom_call.1} parent=1 // pred_check_branch
      %172 = sbr.rel (0) target = $region41
    $region40: #{tpu_custom_call.1} parent=1 // pred_region
      %173 = dma.done [#allocation4], 16
    $region41: #{tpu_custom_call.1} parent=1 // pred_fallthru
      _
    %174 = vsyncpa [#allocation4], 1

</llo_original>
